<compile_context>
chip_gen: v7x
topology: tpu7x:2x2x1
jax: 0.10.0
libtpu: 0.0.40
codegen_flags: <defaults>
</compile_context>

<pallas_src>
import math

import jax
import jax.numpy as jnp
from jax import lax
from jax.experimental import pallas as pl
from jax.experimental.pallas import tpu as pltpu

_MASK_VALUE = -1e30  # finite, dtype-safe "minus infinity" for masked scores


# ---------------------------------------------------------------------------
# Kernel 1: tiled dense projection  y = x @ W  (f32 accumulation)
# ---------------------------------------------------------------------------
def _matmul_kernel(x_ref, w_ref, o_ref, acc_ref):
    @pl.when(pl.program_id(2) == 0)
    def _():
        acc_ref[...] = jnp.zeros(acc_ref.shape, jnp.float32)

    acc_ref[...] += jnp.dot(x_ref[...], w_ref[...],
                            preferred_element_type=jnp.float32)

    @pl.when(pl.program_id(2) == pl.num_programs(2) - 1)
    def _():
        o_ref[...] = acc_ref[...].astype(o_ref.dtype)


def _fit_tile(dim, target, align):
    """Largest tile <= target that divides `dim` and is a multiple of `align`;
    falls back to the full dimension (small / non-aligned shapes)."""
    if dim <= target:
        return dim
    t = (target // align) * align
    while t >= align:
        if dim % t == 0:
            return t
        t -= align
    return dim


def linear(x2d, w, out_dtype=None, tm=256, tn=256, tk=256):
    M, K = x2d.shape
    K2, N = w.shape
    assert K == K2
    out_dtype = out_dtype or x2d.dtype
    btm = _fit_tile(M, tm, 8)
    btn = _fit_tile(N, tn, 128)
    btk = _fit_tile(K, tk, 128)
    grid = (M // btm, N // btn, K // btk)
    in_itemsize = jnp.dtype(x2d.dtype).itemsize
    cost = pl.CostEstimate(
        flops=2 * M * N * K,
        transcendentals=0,
        bytes_accessed=(M * K + K * N) * in_itemsize
        + M * N * jnp.dtype(out_dtype).itemsize,
    )
    return pl.pallas_call(
        _matmul_kernel,
        out_shape=jax.ShapeDtypeStruct((M, N), out_dtype),
        grid_spec=pltpu.PrefetchScalarGridSpec(
            num_scalar_prefetch=0,
            grid=grid,
            in_specs=[
                pl.BlockSpec((btm, btk), lambda i, j, k: (i, k)),
                pl.BlockSpec((btk, btn), lambda i, j, k: (k, j)),
            ],
            out_specs=pl.BlockSpec((btm, btn), lambda i, j, k: (i, j)),
            scratch_shapes=[pltpu.VMEM((btm, btn), jnp.float32)],
        ),
        compiler_params=pltpu.CompilerParams(
            dimension_semantics=("parallel", "parallel", "arbitrary")),
        cost_estimate=cost,
    )(x2d, w)


# ---------------------------------------------------------------------------
# Kernel 2: per-batch, all-heads attention with flash-style kv tiling.
# grid = (batch, kv_tiles); valid_lens (length B) is scalar-prefetched (SMEM).
# ---------------------------------------------------------------------------
def _make_attn_kernel(num_heads, head_dim):
    scale = 1.0 / math.sqrt(head_dim)

    def kernel(vl_ref, q_ref, k_ref, v_ref, o_ref, m_sc, l_sc, acc_sc):
        b = pl.program_id(0)
        kv = pl.program_id(1)
        n_kv = pl.num_programs(1)

        @pl.when(kv == 0)
        def _():
            m_sc[...] = jnp.full(m_sc.shape, _MASK_VALUE, jnp.float32)
            l_sc[...] = jnp.zeros(l_sc.shape, jnp.float32)
            acc_sc[...] = jnp.zeros(acc_sc.shape, jnp.float32)

        q = q_ref[0] * scale          # (Sq, H) -- scale folded into q once
        k = k_ref[0]                  # (Tk, H)
        v = v_ref[0]                  # (Tk, H)

        sq = q.shape[0]
        tk = k.shape[0]
        vl = vl_ref[b]                # scalar int32 valid length for batch b
        col = lax.broadcasted_iota(jnp.int32, (sq, tk), 1) + kv * tk
        valid = col < vl

        # All heads of this batch handled in one grid step (static unroll);
        # head slices come straight out of the (S, H) projections, so there is
        # no XLA-level transpose_qkv between pallas_calls.
        for h in range(num_heads):
            sl = slice(h * head_dim, (h + 1) * head_dim)
            qh = q[:, sl]             # (Sq, Dh)
            kh = k[:, sl]             # (Tk, Dh)
            vh = v[:, sl]             # (Tk, Dh)

            s = jnp.dot(qh, kh.T, preferred_element_type=jnp.float32)
            s = jnp.where(valid, s, _MASK_VALUE)                  # (Sq, Tk)

            m_prev = m_sc[h]                                      # (Sq, 1)
            m_new = jnp.maximum(m_prev, s.max(axis=-1, keepdims=True))
            alpha = jnp.exp(m_prev - m_new)
            p = jnp.exp(s - m_new)                                # (Sq, Tk)

            l_sc[h] = alpha * l_sc[h] + p.sum(axis=-1, keepdims=True)
            acc_sc[h] = alpha * acc_sc[h] + jnp.dot(
                p.astype(vh.dtype), vh, preferred_element_type=jnp.float32)
            m_sc[h] = m_new

        @pl.when(kv == n_kv - 1)
        def _():
            outs = []
            for h in range(num_heads):
                inv = pl.reciprocal(l_sc[h], approx=True)   # EUP slot (free)
                outs.append(acc_sc[h] * inv)
            # Lane-dense (Sq, num_heads*head_dim) store: heads un-split here
            # instead of with an XLA transpose_output afterwards.
            o_ref[0] = jnp.concatenate(outs, axis=-1).astype(o_ref.dtype)

    return kernel


def _pick_kv_tile(sk):
    # Keep the per-step K/V tile modest so scores + double-buffers stay
    # comfortably VMEM-resident even for long Sk (matters most on v7x).
    for t in (512, 256, 128):
        if sk > t and sk % t == 0:
            return t
    return sk


def _attention(qp, kp, vp, valid_lens, num_heads):
    B, Sq, H = qp.shape
    _, Sk, _ = kp.shape
    assert H % num_heads == 0
    Dh = H // num_heads
    Tk = _pick_kv_tile(Sk)
    itemsize = jnp.dtype(qp.dtype).itemsize
    cost = pl.CostEstimate(
        flops=4 * B * Sq * Sk * H,                 # QK^T + PV
        transcendentals=B * num_heads * Sq * Sk,   # exp
        bytes_accessed=(qp.size + kp.size + vp.size) * itemsize
        + B * Sq * H * 4,
    )
    kernel = _make_attn_kernel(num_heads, Dh)
    return pl.pallas_call(
        kernel,
        out_shape=jax.ShapeDtypeStruct((B, Sq, H), jnp.float32),
        grid_spec=pltpu.PrefetchScalarGridSpec(
            num_scalar_prefetch=1,
            grid=(B, Sk // Tk),
            in_specs=[
                pl.BlockSpec((1, Sq, H), lambda b, kv, vl: (b, 0, 0)),
                pl.BlockSpec((1, Tk, H), lambda b, kv, vl: (b, kv, 0)),
                pl.BlockSpec((1, Tk, H), lambda b, kv, vl: (b, kv, 0)),
            ],
            out_specs=pl.BlockSpec((1, Sq, H), lambda b, kv, vl: (b, 0, 0)),
            scratch_shapes=[
                pltpu.VMEM((num_heads, Sq, 1), jnp.float32),   # running max
                pltpu.VMEM((num_heads, Sq, 1), jnp.float32),   # running sum
                pltpu.VMEM((num_heads, Sq, Dh), jnp.float32),  # weighted acc
            ],
        ),
        compiler_params=pltpu.CompilerParams(
            dimension_semantics=("parallel", "arbitrary")),
        cost_estimate=cost,
    )(valid_lens, qp, kp, vp)


# ---------------------------------------------------------------------------
# Wrapper reproducing MultiHeadAttention.forward
# ---------------------------------------------------------------------------
def multihead_attention(q, k, v, valid_lens, Wq, Wk, Wv, Wo, num_heads,
                        matmul_dtype=None):
    """Weights are (in_features, out_features): y = x @ W (nn.Linear, bias=False).
    matmul_dtype=jnp.bfloat16 runs the MXU matmuls in bf16 with f32 accumulation
    (v6e/v7x); softmax / accumulators stay f32; final output is q.dtype."""
    B, Sq, Dq = q.shape
    _, Sk, Dk = k.shape
    Dv = v.shape[-1]
    H = Wq.shape[1]

    cast = (lambda x: x.astype(matmul_dtype)) if matmul_dtype is not None else (lambda x: x)
    proj_dtype = matmul_dtype if matmul_dtype is not None else q.dtype
    qx, kx, vx = cast(q), cast(k), cast(v)
    Wq_, Wk_, Wv_, Wo_ = cast(Wq), cast(Wk), cast(Wv), cast(Wo)

    if (q is k) and (k is v) and (Dq == Dk == Dv):
        # Self-attention fast path: fused QKV projection (one pallas_call,
        # one HBM read of x, MXU sees an (M x 3H) output tile).
        W_qkv = jnp.concatenate([Wq_, Wk_, Wv_], axis=1)          # (D, 3H)
        qkv = linear(qx.reshape(B * Sq, Dq), W_qkv, out_dtype=proj_dtype)
        qp = qkv[:, :H].reshape(B, Sq, H)
        kp = qkv[:, H:2 * H].reshape(B, Sq, H)
        vp = qkv[:, 2 * H:].reshape(B, Sq, H)
    else:
        qp = linear(qx.reshape(B * Sq, Dq), Wq_,
                    out_dtype=proj_dtype).reshape(B, Sq, H)
        if (k is v) and (Dk == Dv):
            # Shared key/value input: fuse K and V projections.
            W_kv = jnp.concatenate([Wk_, Wv_], axis=1)            # (Dk, 2H)
            kvp = linear(kx.reshape(B * Sk, Dk), W_kv, out_dtype=proj_dtype)
            kp = kvp[:, :H].reshape(B, Sk, H)
            vp = kvp[:, H:].reshape(B, Sk, H)
        else:
            kp = linear(kx.reshape(B * Sk, Dk), Wk_,
                        out_dtype=proj_dtype).reshape(B, Sk, H)
            vp = linear(vx.reshape(B * v.shape[1], Dv), Wv_,
                        out_dtype=proj_dtype).reshape(B, Sk, H)

    if valid_lens is None:
        vl = jnp.full((B,), Sk, dtype=jnp.int32)
    else:
        vl = valid_lens.astype(jnp.int32)          # length B, no jnp.repeat

    attn = _attention(qp, kp, vp, vl, num_heads)   # (B, Sq, H), f32, lane-dense

    o = linear(attn.reshape(B * Sq, H).astype(proj_dtype), Wo_,
               out_dtype=q.dtype).reshape(B, Sq, H)
    return o


# ---------------------------------------------------------------------------
# Pure-JAX reference (independent correctness check)
# ---------------------------------------------------------------------------
def transpose_qkv(x, num_heads):
    B, S, H = x.shape
    x = x.reshape(B, S, num_heads, H // num_heads)
    x = x.transpose(0, 2, 1, 3)
    return x.reshape(B * num_heads, S, H // num_heads)


def transpose_output(x, num_heads):
    BH, S, Dh = x.shape
    x = x.reshape(BH // num_heads, num_heads, S, Dh)
    x = x.transpose(0, 2, 1, 3)
    return x.reshape(x.shape[0], x.shape[1], num_heads * Dh)


def _reference(q, k, v, valid_lens, Wq, Wk, Wv, Wo, num_heads):
    qp = transpose_qkv(q @ Wq, num_heads)
    kp = transpose_qkv(k @ Wk, num_heads)
    vp = transpose_qkv(v @ Wv, num_heads)
    d = qp.shape[-1]
    scores = jnp.einsum("bqd,bkd->bqk", qp, kp) / math.sqrt(d)
    vl = jnp.repeat(valid_lens, num_heads, axis=0)
    col = jnp.arange(kp.shape[1])[None, None, :]
    scores = jnp.where(col < vl[:, None, None], scores, _MASK_VALUE)
    w = jax.nn.softmax(scores, axis=-1)
    out = transpose_output(jnp.einsum("bqk,bkd->bqd", w, vp), num_heads)
    return out @ Wo


if __name__ == "__main__":
    B, Sq, Sk = 2, 8, 16
    num_hiddens, num_heads = 32, 4

    key = jax.random.PRNGKey(0)
    kx, kq2, kkv2, k1, k2, k3, k4 = jax.random.split(key, 7)

    X = jax.random.normal(kx, (B, Sq, num_hiddens), jnp.float32)
    valid_lens_self = jnp.array([3, 8], dtype=jnp.int32)

    s = 1.0 / math.sqrt(num_hiddens)
    Wq = jax.random.uniform(k1, (num_hiddens, num_hiddens), jnp.float32, -s, s)
    Wk = jax.random.uniform(k2, (num_hiddens, num_hiddens), jnp.float32, -s, s)
    Wv = jax.random.uniform(k3, (num_hiddens, num_hiddens), jnp.float32, -s, s)
    Wo = jax.random.uniform(k4, (num_hiddens, num_hiddens), jnp.float32, -s, s)

    # --- self-attention (q = k = v = X): exercises the fused-QKV path -------
    out = multihead_attention(X, X, X, valid_lens_self,
                              Wq, Wk, Wv, Wo, num_heads)
    out = jax.block_until_ready(out)
    ref = _reference(X, X, X, valid_lens_self, Wq, Wk, Wv, Wo, num_heads)
    assert out.shape == (B, Sq, num_hiddens)
    # tolerance accounts for the approximate EUP reciprocal in the softmax
    assert jnp.allclose(out, ref, atol=1e-2, rtol=1e-2)

    # --- cross-attention (separate Q, shared K/V, longer Sk) ----------------
    Q2 = jax.random.normal(kq2, (B, Sq, num_hiddens), jnp.float32)
    KV2 = jax.random.normal(kkv2, (B, Sk, num_hiddens), jnp.float32)
    valid_lens_cross = jnp.array([5, 12], dtype=jnp.int32)
    out2 = multihead_attention(Q2, KV2, KV2, valid_lens_cross,
                               Wq, Wk, Wv, Wo, num_heads)
    out2 = jax.block_until_ready(out2)
    ref2 = _reference(Q2, KV2, KV2, valid_lens_cross,
                      Wq, Wk, Wv, Wo, num_heads)
    assert jnp.allclose(out2, ref2, atol=1e-2, rtol=1e-2)

    # --- bf16 MXU path (v6e/v7x perf mode), loose numeric check -------------
    out_bf16 = multihead_attention(X, X, X, valid_lens_self,
                                   Wq, Wk, Wv, Wo, num_heads,
                                   matmul_dtype=jnp.bfloat16)
    out_bf16 = jax.block_until_ready(out_bf16)
    assert jnp.all(jnp.isfinite(out_bf16))
    assert jnp.allclose(out_bf16.astype(jnp.float32), ref, atol=0.15, rtol=0.15)

    print("KERNEL_OK")
</pallas_src>

<mosaic_0001>
module attributes {stable_mosaic.version = 11 : i64} {
  func.func @_matmul_kernel(%arg0: i32, %arg1: i32, %arg2: i32, %arg3: memref<16x32xf32, #tpu.memory_space<vmem>>, %arg4: memref<32x96xf32, #tpu.memory_space<vmem>>, %arg5: memref<16x96xf32, #tpu.memory_space<vmem>>, %arg6: memref<16x96xf32, #tpu.memory_space<vmem>>) attributes {dimension_semantics = [#tpu.dimension_semantics<parallel>, #tpu.dimension_semantics<parallel>, #tpu.dimension_semantics<arbitrary>], iteration_bounds = array<i64: 1, 1, 1>, scalar_prefetch = 0 : i64, scratch_operands = 1 : i64, tpu.core_type = #tpu.core_type<tc>, window_params = [{transform_indices = @transform_0, window_bounds = array<i64: 16, 32>}, {transform_indices = @transform_1, window_bounds = array<i64: 32, 96>}, {transform_indices = @transform_2, window_bounds = array<i64: 16, 96>}]} {
    %c0_i32 = arith.constant 0 : i32
    %0 = arith.cmpi eq, %arg2, %c0_i32 : i32
    %1 = arith.extui %0 : i1 to i32
    %c0_i32_0 = arith.constant 0 : i32
    %2 = arith.cmpi ne, %1, %c0_i32_0 : i32
    scf.if %2 {
      %cst_10 = arith.constant 0.000000e+00 : f32
      %12 = vector.broadcast %cst_10 : f32 to vector<16x96xf32>
      %c0_11 = arith.constant 0 : index
      %c0_12 = arith.constant 0 : index
      %13 = vector.load %arg6[%c0_11, %c0_12] : memref<16x96xf32, #tpu.memory_space<vmem>>, vector<16x96xf32>
      tpu.vector_store %arg6[%c0_11, %c0_12], %12 {strides = array<i32>} : memref<16x96xf32, #tpu.memory_space<vmem>>, vector<16x96xf32>,
    } else {
    }
    %c0 = arith.constant 0 : index
    %c0_1 = arith.constant 0 : index
    %3 = vector.load %arg6[%c0, %c0_1] : memref<16x96xf32, #tpu.memory_space<vmem>>, vector<16x96xf32>
    %c0_2 = arith.constant 0 : index
    %c0_3 = arith.constant 0 : index
    %4 = vector.load %arg3[%c0_2, %c0_3] : memref<16x32xf32, #tpu.memory_space<vmem>>, vector<16x32xf32>
    %c0_4 = arith.constant 0 : index
    %c0_5 = arith.constant 0 : index
    %5 = vector.load %arg4[%c0_4, %c0_5] : memref<32x96xf32, #tpu.memory_space<vmem>>, vector<32x96xf32>
    %cst = arith.constant dense<0.000000e+00> : vector<16x96xf32>
    %6 = tpu.matmul %4, %5, %cst {dimension_numbers = #tpu.dot_dimension_numbers<[1], [0], [0], [1], [0, 0, 1, 1], [], []>} : vector<16x32xf32>, vector<32x96xf32>, vector<16x96xf32> -> vector<16x96xf32>
    %7 = arith.addf %3, %6 : vector<16x96xf32>
    %c0_6 = arith.constant 0 : index
    %c0_7 = arith.constant 0 : index
    %8 = vector.load %arg6[%c0_6, %c0_7] : memref<16x96xf32, #tpu.memory_space<vmem>>, vector<16x96xf32>
    tpu.vector_store %arg6[%c0_6, %c0_7], %7 {strides = array<i32>} : memref<16x96xf32, #tpu.memory_space<vmem>>, vector<16x96xf32>,
    %c0_i32_8 = arith.constant 0 : i32
    %9 = arith.cmpi eq, %arg2, %c0_i32_8 : i32
    %10 = arith.extui %9 : i1 to i32
    %c0_i32_9 = arith.constant 0 : i32
    %11 = arith.cmpi ne, %10, %c0_i32_9 : i32
    scf.if %11 {
      %c0_10 = arith.constant 0 : index
      %c0_11 = arith.constant 0 : index
      %12 = vector.load %arg6[%c0_10, %c0_11] : memref<16x96xf32, #tpu.memory_space<vmem>>, vector<16x96xf32>
      %c0_12 = arith.constant 0 : index
      %c0_13 = arith.constant 0 : index
      %13 = vector.load %arg5[%c0_12, %c0_13] : memref<16x96xf32, #tpu.memory_space<vmem>>, vector<16x96xf32>
      tpu.vector_store %arg5[%c0_12, %c0_13], %12 {strides = array<i32>} : memref<16x96xf32, #tpu.memory_space<vmem>>, vector<16x96xf32>,
    } else {
    }
    return
  }
  func.func @transform_0(%arg0: i32, %arg1: i32, %arg2: i32) -> (i32, i32) {
    %c0_i32 = arith.constant 0 : i32
    return %arg0, %arg2 : i32, i32
  }
  func.func @transform_1(%arg0: i32, %arg1: i32, %arg2: i32) -> (i32, i32) {
    %c0_i32 = arith.constant 0 : i32
    return %arg2, %arg1 : i32, i32
  }
  func.func @transform_2(%arg0: i32, %arg1: i32, %arg2: i32) -> (i32, i32) {
    %c0_i32 = arith.constant 0 : i32
    return %arg0, %arg1 : i32, i32
  }
}

</mosaic_0001>

<llo_original>
// kernel: tpu_custom_call.1
$region0: #{tpu_custom_call.1}
  #allocation0 [shape = 'u32[]', space=smem, size = 0x4, offset = 0x4, fixed_abs, tag = 'smem constant byte address 0x4 - core index']
  #allocation1 [shape = 'u32[144,128]{1,0:T(1,128)}', space=vmem, size = 0x12000, scoped, tag = 'internal scratch']
  #allocation2 [shape = 'f32[16,96]{1,0:T(8,128)}', space=vmem, size = 0x2000, scoped, tag = 'scratch operand']
  %s0 = inlined_call_operand.hbm [shape: f32[16,32], index: 0, kind: input, shape index: {}]
  %s1 = inlined_call_operand.hbm [shape: f32[32,96], index: 1, kind: input, shape index: {}]
  %s2 = inlined_call_operand.hbm [shape: f32[16,96], index: 2, kind: output, shape index: {}]
  %s3 = sld [smem:[#allocation0]]
  $region34: #{tpu_custom_call.1} parent=0
    _
  %s5 = ssub.s32 1, %s3
  %s6 = scalar_select 0, %s5, %s3
  $region1: #{tpu_custom_call.1} parent=0
    #allocation3 [shape = 'u8[8192]{0}', space=vmem, size = 0x2000, scoped, tag = 'input window, operand 0, single buffered']
    #allocation4 [shape = 's32[1]{0}', space=sflag, size = 0x4, scoped, tag = 'scoped memory for tpu_custom_call.1']
    #allocation5 [shape = 's32[1]{0}', space=sflag, size = 0x4, scoped, tag = 'scoped memory for tpu_custom_call.1']
    #allocation6 [shape = 'u8[16384]{0}', space=vmem, size = 0x4000, scoped, tag = 'input window, operand 1, single buffered']
    #allocation7 [shape = 's32[1]{0}', space=sflag, size = 0x4, scoped, tag = 'scoped memory for tpu_custom_call.1']
    #allocation8 [shape = 'u8[8192]{0}', space=vmem, size = 0x2000, scoped, tag = 'output window, operand 0, single buffered']
    %7 = vsyncpa [#allocation4], 0
    %8 = vsyncpa [#allocation7], 0
    %9 = vsyncpa [#allocation5], 0
    // Predicated region
    $region2: #{tpu_custom_call.1} parent=1 // pred_check
      _
    $region3: #{tpu_custom_call.1} parent=1 // pred_check_branch
      %11 = sbr.rel (0) target = $region5
    $region4: #{tpu_custom_call.1} parent=1 // pred_region
      %s13 = ssub.s32 256, 256
      %14 = vsyncadd [#allocation4], %s13
      %s15 = sshll.u32 [#allocation3], 4
      %s16 = int_to_ptr.vmem [resolvable:$true] %s15
      %21 = dma.hbm_to_vmem [thread:$0]  %s0, 256, %s16, [#allocation4], 128, 128, 8
    $region5: #{tpu_custom_call.1} parent=1 // pred_fallthru
      _
    // Predicated region
    $region6: #{tpu_custom_call.1} parent=1 // pred_check
      _
    $region7: #{tpu_custom_call.1} parent=1 // pred_check_branch
      %23 = sbr.rel (0) target = $region9
    $region8: #{tpu_custom_call.1} parent=1 // pred_region
      %s25 = ssub.s32 512, 512
      %26 = vsyncadd [#allocation7], %s25
      %s27 = sshll.u32 [#allocation6], 4
      %s28 = int_to_ptr.vmem [resolvable:$true] %s27
      %33 = dma.hbm_to_vmem [thread:$0]  %s1, 512, %s28, [#allocation7], 128, 128, 8
    $region9: #{tpu_custom_call.1} parent=1 // pred_fallthru
      _
    // Predicated region
    $region10: #{tpu_custom_call.1} parent=1 // pred_check
      _
    $region11: #{tpu_custom_call.1} parent=1 // pred_check_branch
      %35 = sbr.rel (0) target = $region13
    $region12: #{tpu_custom_call.1} parent=1 // pred_region
      %36 = dma.done [#allocation4], 256
    $region13: #{tpu_custom_call.1} parent=1 // pred_fallthru
      _
    // Predicated region
    $region14: #{tpu_custom_call.1} parent=1 // pred_check
      _
    $region15: #{tpu_custom_call.1} parent=1 // pred_check_branch
      %38 = sbr.rel (0) target = $region17
    $region16: #{tpu_custom_call.1} parent=1 // pred_region
      %39 = dma.done [#allocation7], 512
    $region17: #{tpu_custom_call.1} parent=1 // pred_fallthru
      _
    %p40 = scmp.eq.s32.totalorder 0, 0
    // Predicated region
    $region18: #{tpu_custom_call.1} parent=1 // pred_check
      %p41 = pneg %p40
    $region19: #{tpu_custom_call.1} parent=1 // pred_check_branch
      %43 = sbr.rel (%p41) target = $region21
    $region20: #{tpu_custom_call.1} parent=1 // pred_region
      %vm44 = vcmask 785408
      %45 = vst.msk [vmem:[#allocation2] sm:$0xff] %vm44, 0.0
      %46 = vst.msk [vmem:[#allocation2 + $0x8] sm:$0xff] %vm44, 0.0
    $region21: #{tpu_custom_call.1} parent=1 // pred_fallthru
      _
    %v47 = vld [vmem:[#allocation2] sm:$0xff]
    %v48 = vld [vmem:[#allocation2 + $0x8] sm:$0xff]
    %v49 = vld [vmem:[#allocation3] sm:$0xff]
    %v50 = vld [vmem:[#allocation3 + $0x8] sm:$0xff]
    %v51 = vld [vmem:[#allocation6] sm:$0xff]
    %v52 = vld [vmem:[#allocation6 + $0x8] sm:$0xff]
    %v53 = vld [vmem:[#allocation6 + $0x10] sm:$0xff]
    %v54 = vld [vmem:[#allocation6 + $0x18] sm:$0xff]
    %vm55 = vcmask 261120
    %v57 = vsel %vm55, %v49, 0
    %v60 = vsel %vm55, %v50, 0
    %62 = vmatprep.subr.mxu0 0.0
    %63 = vmatpush1.msra.mxu0 %v51
    %64 = vmatprep.subr.mxu0 0.0
    %65 = vmatpush1.msra.mxu0 %v52
    %66 = vmatprep.subr.mxu0 0.0
    %67 = vmatpush1.msra.mxu0 %v53
    %68 = vmatprep.subr.mxu0 0.0
    %69 = vmatpush1.msra.mxu0 %v54
    %70 = vmatprep.subr.mxu0 0.0
    %71 = vmatpush1.msra.mxu0 0.0
    %72 = vmatprep.subr.mxu0 0.0
    %73 = vmatpush1.msra.mxu0 0.0
    %74 = vmatprep.subr.mxu0 0.0
    %75 = vmatpush1.msra.mxu0 0.0
    %76 = vmatprep.subr.mxu0 0.0
    %77 = vmatpush1.msra.mxu0 0.0
    %78 = vmatprep.subr.mxu0 0.0
    %79 = vmatpush1.msra.mxu0 0.0
    %80 = vmatprep.subr.mxu0 0.0
    %81 = vmatpush1.msra.mxu0 0.0
    %82 = vmatprep.subr.mxu0 0.0
    %83 = vmatpush1.msra.mxu0 0.0
    %84 = vmatprep.subr.mxu0 0.0
    %85 = vmatpush1.msra.mxu0 0.0
    %86 = vmatprep.subr.mxu0 0.0
    %87 = vmatpush1.msra.mxu0 0.0
    %88 = vmatprep.subr.mxu0 0.0
    %89 = vmatpush1.msra.mxu0 0.0
    %90 = vmatprep.subr.mxu0 0.0
    %91 = vmatpush1.msra.mxu0 0.0
    %92 = vmatprep.subr.mxu0 0.0
    %93 = vmatpush1.msra.mxu0 0.0
    %94 = vmatprep.subr.mxu0 0.0
    %95 = vmatpush1.msra.mxu0 0.0
    %96 = vmatprep.subr.mxu0 0.0
    %97 = vmatpush1.msra.mxu0 0.0
    %98 = vmatprep.subr.mxu0 0.0
    %99 = vmatpush1.msra.mxu0 0.0
    %100 = vmatprep.subr.mxu0 0.0
    %101 = vmatpush1.msra.mxu0 0.0
    %102 = vmatprep.subr.mxu0 0.0
    %103 = vmatpush1.msra.mxu0 0.0
    %104 = vmatprep.subr.mxu0 0.0
    %105 = vmatpush1.msra.mxu0 0.0
    %106 = vmatprep.subr.mxu0 0.0
    %107 = vmatpush1.msra.mxu0 0.0
    %108 = vmatprep.subr.mxu0 0.0
    %109 = vmatpush1.msra.mxu0 0.0
    %110 = vmatprep.subr.mxu0 0.0
    %111 = vmatpush1.msra.mxu0 0.0
    %112 = vmatprep.subr.mxu0 0.0
    %113 = vmatpush1.msra.mxu0 0.0
    %114 = vmatprep.subr.mxu0 0.0
    %115 = vmatpush1.msra.mxu0 0.0
    %116 = vmatprep.subr.mxu0 0.0
    %117 = vmatpush1.msra.mxu0 0.0
    %118 = vmatprep.subr.mxu0 0.0
    %119 = vmatpush1.msra.mxu0 0.0
    %120 = vmatprep.subr.mxu0 0.0
    %121 = vmatpush1.msra.mxu0 0.0
    %122 = vmatprep.subr.mxu0 0.0
    %123 = vmatpush1.msra.mxu0 0.0
    %124 = vmatprep.subr.mxu0 0.0
    %125 = vmatpush1.msra.mxu0 0.0
    %126 = vmatprep.mubr.f32.mxu0 0.0
    %127 = vmatmul.mubr.f32.gmra.mrb[0].mxu0 %v57
    %v128 = vpop.f32.mrb[0].mxu0
    %v129 = vadd.f32 0.0, %v128
    %v130 = vpop.f32.mrb[0].mxu0
    %131 = vmatprep.mubr.f32.mxu0 0.0
    %132 = vmatmul.mubr.f32.gmra.mrb[0].mxu0 %v60
    %v133 = vpop.f32.mrb[0].mxu0
    %v134 = vadd.f32 0.0, %v133
    %v135 = vpop.f32.mrb[0].mxu0
    %136 = vdwg.mxu0
    %v137 = vadd.f32 %v47, %v129
    %v138 = vadd.f32 %v48, %v134
    %vm139 = vcmask 785408
    %140 = vst.msk [vmem:[#allocation2] sm:$0xff] %vm139, %v137
    %141 = vst.msk [vmem:[#allocation2 + $0x8] sm:$0xff] %vm139, %v138
    // Predicated region
    $region22: #{tpu_custom_call.1} parent=1 // pred_check
      %p142 = pneg %p40
    $region23: #{tpu_custom_call.1} parent=1 // pred_check_branch
      %144 = sbr.rel (%p142) target = $region25
    $region24: #{tpu_custom_call.1} parent=1 // pred_region
      %v145 = vld [vmem:[#allocation2] sm:$0xff]
      %v146 = vld [vmem:[#allocation2 + $0x8] sm:$0xff]
      %147 = vst.msk [vmem:[#allocation8] sm:$0xff] %vm139, %v145
      %148 = vst.msk [vmem:[#allocation8 + $0x8] sm:$0xff] %vm139, %v146
    $region25: #{tpu_custom_call.1} parent=1 // pred_fallthru
      _
    // Predicated region
    $region26: #{tpu_custom_call.1} parent=1 // pred_check
      _
    $region27: #{tpu_custom_call.1} parent=1 // pred_check_branch
      %150 = sbr.rel (0) target = $region29
    $region28: #{tpu_custom_call.1} parent=1 // pred_region
      %s152 = ssub.s32 256, 256
      %153 = vsyncadd [#allocation5], %s152
      %s154 = sshll.u32 [#allocation8], 4
      %s155 = int_to_ptr.vmem [resolvable:$true] %s154
      %160 = dma.vmem_to_hbm [thread:$0]  %s155, 256, %s2, [#allocation5], 128, 128, 8
    $region29: #{tpu_custom_call.1} parent=1 // pred_fallthru
      _
    // Predicated region
    $region30: #{tpu_custom_call.1} parent=1 // pred_check
      _
    $region31: #{tpu_custom_call.1} parent=1 // pred_check_branch
      %162 = sbr.rel (0) target = $region33
    $region32: #{tpu_custom_call.1} parent=1 // pred_region
      %163 = dma.done [#allocation5], 256
    $region33: #{tpu_custom_call.1} parent=1 // pred_fallthru
      _
    %164 = vsyncpa [#allocation4], 1
    %165 = vsyncpa [#allocation7], 1
    %166 = vsyncpa [#allocation5], 1

</llo_original>
